<compile_context>
chip_gen: v7x
topology: tpu7x:2x2x1
jax: 0.10.0
libtpu: 0.0.40
codegen_flags: <defaults>
</compile_context>

<pallas_src>
import functools

import jax
import jax.numpy as jnp
from jax.experimental import pallas as pl
from jax.experimental.pallas import tpu as pltpu

Z_DIM = 64
HIDDEN = 256
IMG_DIM = 784  # 28*28, the usual MNIST GAN setup

_SPLIT_ROWS = 256               # batches >= this always get >= 2 grid steps (v7x megacore)
_VMEM_LIMIT = 32 * 1024 * 1024  # covers 1024-row tiles on v5e's 16 MiB default scoped VMEM


def _round_up(x, m):
    return ((x + m - 1) // m) * m


def _choose_tile_m(batch, tile_m):
    b16 = _round_up(batch, 16)          # bf16 sublane tile is 16
    if b16 > tile_m:
        return tile_m                   # already several grid steps
    if b16 >= _SPLIT_ROWS:
        # Whole batch would fit in one step; split into two so both
        # TensorCores get work on v7x (extra step costs ~0.35 us elsewhere).
        return _round_up(b16 // 2, 16)
    return b16                          # small batch: one step, minimal padding


def _generator_kernel(x_ref, w1_ref, b1_ref, w2_ref, b2_ref, o_ref):
    # Linear 1 in f32 (K=64 is tiny; kernel is HBM-write bound so the extra
    # MXU passes are hidden and parity with the f32 reference improves).
    h = jnp.dot(x_ref[...], w1_ref[...], preferred_element_type=jnp.float32)
    h = h + b1_ref[...]
    # LeakyReLU(negative_slope=0.1): mul + max (2 VPU ops, no compare/select).
    h = jnp.maximum(h, 0.1 * h)
    # Linear 2: bf16 operands, f32 MXU accumulation.
    y = jnp.dot(h.astype(jnp.bfloat16), w2_ref[...],
                preferred_element_type=jnp.float32)
    y = y + b2_ref[...]
    # Tanh (EUP) and store in the output dtype (bf16 halves HBM write traffic).
    o_ref[...] = jnp.tanh(y).astype(o_ref.dtype)


def prepare_generator_params(w1, b1, w2, b2):
    """One-time parameter prep; hoists casts/reshapes out of the hot path."""
    return (jnp.asarray(w1, jnp.float32),
            jnp.asarray(b1, jnp.float32).reshape(1, -1),
            jnp.asarray(w2, jnp.bfloat16),
            jnp.asarray(b2, jnp.float32).reshape(1, -1))


@functools.partial(jax.jit, static_argnames=("tile_m", "out_dtype"))
def generator_forward(x, w1, b1_2d, w2, b2_2d, *, tile_m=1024,
                      out_dtype=jnp.bfloat16):
    """Generator forward: tanh(leaky_relu(x @ w1 + b1, 0.1) @ w2 + b2).

    x: (B, z_dim) float32; params from `prepare_generator_params`.
    Returns (B, img_dim) in `out_dtype` (bf16 by default: the kernel is
    HBM-output-write bound, so the narrower store is the biggest lever).
    """
    B, zd = x.shape
    hid = w1.shape[1]
    img = w2.shape[1]

    tm = _choose_tile_m(B, tile_m)
    B_p = _round_up(B, tm)
    x_p = x if B_p == B else jnp.pad(x, ((0, B_p - B), (0, 0)))

    out_itemsize = jnp.dtype(out_dtype).itemsize
    cost = pl.CostEstimate(
        flops=2 * B_p * (zd * hid + hid * img),
        transcendentals=B_p * img,  # tanh
        bytes_accessed=(x_p.size * x_p.dtype.itemsize
                        + w1.size * w1.dtype.itemsize
                        + b1_2d.size * b1_2d.dtype.itemsize
                        + w2.size * w2.dtype.itemsize
                        + b2_2d.size * b2_2d.dtype.itemsize
                        + B_p * img * out_itemsize),
    )

    out = pl.pallas_call(
        _generator_kernel,
        out_shape=jax.ShapeDtypeStruct((B_p, img), out_dtype),
        grid_spec=pltpu.PrefetchScalarGridSpec(
            num_scalar_prefetch=0,
            grid=(B_p // tm,),
            in_specs=[
                # x: tiled over batch.
                pl.BlockSpec((tm, zd), lambda i: (i, 0)),
                # weights/biases: whole arrays, same block every grid step.
                pl.BlockSpec((zd, hid), lambda i: (0, 0)),
                pl.BlockSpec((1, hid), lambda i: (0, 0)),
                pl.BlockSpec((hid, img), lambda i: (0, 0)),
                pl.BlockSpec((1, img), lambda i: (0, 0)),
            ],
            # Full-extent 784-wide output block: legal (equals full array dim),
            # avoids the post-kernel feature slice; only the 16-lane tail vreg
            # of each row is a masked store.
            out_specs=pl.BlockSpec((tm, img), lambda i: (i, 0)),
        ),
        compiler_params=pltpu.CompilerParams(
            dimension_semantics=("parallel",),
            vmem_limit_bytes=_VMEM_LIMIT,
        ),
        cost_estimate=cost,
    )(x_p, w1, b1_2d, w2, b2_2d)

    # Strip batch padding only (contiguous leading-dim slice, usually a no-op).
    return out if B_p == B else out[:B]


def init_generator_params(key, z_dim=Z_DIM, hidden=HIDDEN, img_dim=IMG_DIM):
    """Deterministic init mimicking PyTorch nn.Linear (uniform +-1/sqrt(fan_in))."""
    k1, k2, k3, k4 = jax.random.split(key, 4)
    lim1 = 1.0 / jnp.sqrt(z_dim)
    lim2 = 1.0 / jnp.sqrt(hidden)
    w1 = jax.random.uniform(k1, (z_dim, hidden), jnp.float32, -lim1, lim1)
    b1 = jax.random.uniform(k2, (hidden,), jnp.float32, -lim1, lim1)
    w2 = jax.random.uniform(k3, (hidden, img_dim), jnp.float32, -lim2, lim2)
    b2 = jax.random.uniform(k4, (img_dim,), jnp.float32, -lim2, lim2)
    return w1, b1, w2, b2


def _reference_forward(x, w1, b1, w2, b2):
    h = x @ w1 + b1
    h = jnp.where(h > 0, h, 0.1 * h)
    return jnp.tanh(h @ w2 + b2)


if __name__ == "__main__":
    key = jax.random.PRNGKey(0)
    k_params, k_noise1, k_noise2 = jax.random.split(key, 3)

    w1, b1, w2, b2 = init_generator_params(k_params)
    params = prepare_generator_params(w1, b1, w2, b2)

    # Small demo batch: single-step grid, batch padded 8 -> 16 rows.
    batch = 8
    z = jax.random.normal(k_noise1, (batch, Z_DIM), jnp.float32)
    out = jax.block_until_ready(generator_forward(z, *params))
    ref = _reference_forward(z, w1, b1, w2, b2)
    assert out.shape == (batch, IMG_DIM)
    # bf16 second matmul + bf16 output vs pure-f32 reference -> loose tol.
    assert jnp.allclose(out.astype(jnp.float32), ref, atol=5e-2, rtol=0.0)

    # Larger batch exercises the multi-step (>=2 grid steps, megacore) path.
    batch2 = 512
    z2 = jax.random.normal(k_noise2, (batch2, Z_DIM), jnp.float32)
    out2 = jax.block_until_ready(generator_forward(z2, *params))
    ref2 = _reference_forward(z2, w1, b1, w2, b2)
    assert out2.shape == (batch2, IMG_DIM)
    assert jnp.allclose(out2.astype(jnp.float32), ref2, atol=5e-2, rtol=0.0)

    print("KERNEL_OK")
</pallas_src>

<mosaic_0001>
module attributes {stable_mosaic.version = 11 : i64} {
  func.func @_generator_kernel(%arg0: i32, %arg1: memref<16x64xf32, #tpu.memory_space<vmem>>, %arg2: memref<64x256xf32, #tpu.memory_space<vmem>>, %arg3: memref<1x256xf32, #tpu.memory_space<vmem>>, %arg4: memref<256x784xbf16, #tpu.memory_space<vmem>>, %arg5: memref<1x784xf32, #tpu.memory_space<vmem>>, %arg6: memref<16x784xbf16, #tpu.memory_space<vmem>>) attributes {dimension_semantics = [#tpu.dimension_semantics<parallel>], iteration_bounds = array<i64: 1>, scalar_prefetch = 0 : i64, scratch_operands = 0 : i64, tpu.core_type = #tpu.core_type<tc>, window_params = [{transform_indices = @transform_0, window_bounds = array<i64: 16, 64>}, {pipeline_mode = #tpu.pipeline_mode<synchronous>, transform_indices = @transform_1, window_bounds = array<i64: 64, 256>}, {pipeline_mode = #tpu.pipeline_mode<synchronous>, transform_indices = @transform_2, window_bounds = array<i64: 1, 256>}, {pipeline_mode = #tpu.pipeline_mode<synchronous>, transform_indices = @transform_3, window_bounds = array<i64: 256, 784>}, {pipeline_mode = #tpu.pipeline_mode<synchronous>, transform_indices = @transform_4, window_bounds = array<i64: 1, 784>}, {transform_indices = @transform_5, window_bounds = array<i64: 16, 784>}]} {
    %c0 = arith.constant 0 : index
    %c0_0 = arith.constant 0 : index
    %0 = vector.load %arg1[%c0, %c0_0] : memref<16x64xf32, #tpu.memory_space<vmem>>, vector<16x64xf32>
    %c0_1 = arith.constant 0 : index
    %c0_2 = arith.constant 0 : index
    %1 = vector.load %arg2[%c0_1, %c0_2] : memref<64x256xf32, #tpu.memory_space<vmem>>, vector<64x256xf32>
    %cst = arith.constant dense<0.000000e+00> : vector<16x256xf32>
    %2 = tpu.matmul %0, %1, %cst {dimension_numbers = #tpu.dot_dimension_numbers<[1], [0], [0], [1], [0, 0, 1, 1], [], []>} : vector<16x64xf32>, vector<64x256xf32>, vector<16x256xf32> -> vector<16x256xf32>
    %c0_3 = arith.constant 0 : index
    %c0_4 = arith.constant 0 : index
    %3 = vector.load %arg3[%c0_3, %c0_4] : memref<1x256xf32, #tpu.memory_space<vmem>>, vector<1x256xf32>
    %4 = vector.broadcast %3 : vector<1x256xf32> to vector<16x256xf32>
    %5 = arith.addf %2, %4 : vector<16x256xf32>
    %cst_5 = arith.constant 1.000000e-01 : f32
    %6 = vector.broadcast %cst_5 : f32 to vector<16x256xf32>
    %7 = arith.mulf %6, %5 : vector<16x256xf32>
    %8 = arith.maximumf %5, %7 : vector<16x256xf32>
    %9 = arith.truncf %8 : vector<16x256xf32> to vector<16x256xbf16>
    %c0_6 = arith.constant 0 : index
    %c0_7 = arith.constant 0 : index
    %10 = vector.load %arg4[%c0_6, %c0_7] : memref<256x784xbf16, #tpu.memory_space<vmem>>, vector<256x784xbf16>
    %cst_8 = arith.constant dense<0.000000e+00> : vector<16x784xf32>
    %11 = tpu.matmul %9, %10, %cst_8 {dimension_numbers = #tpu.dot_dimension_numbers<[1], [0], [0], [1], [0, 0, 1, 1], [], []>} : vector<16x256xbf16>, vector<256x784xbf16>, vector<16x784xf32> -> vector<16x784xf32>
    %c0_9 = arith.constant 0 : index
    %c0_10 = arith.constant 0 : index
    %12 = vector.load %arg5[%c0_9, %c0_10] : memref<1x784xf32, #tpu.memory_space<vmem>>, vector<1x784xf32>
    %13 = vector.broadcast %12 : vector<1x784xf32> to vector<16x784xf32>
    %14 = arith.addf %11, %13 : vector<16x784xf32>
    %15 = math.tanh %14 : vector<16x784xf32>
    %16 = arith.truncf %15 : vector<16x784xf32> to vector<16x784xbf16>
    %c0_11 = arith.constant 0 : index
    %c0_12 = arith.constant 0 : index
    %17 = vector.load %arg6[%c0_11, %c0_12] : memref<16x784xbf16, #tpu.memory_space<vmem>>, vector<16x784xbf16>
    tpu.vector_store %arg6[%c0_11, %c0_12], %16 {strides = array<i32>} : memref<16x784xbf16, #tpu.memory_space<vmem>>, vector<16x784xbf16>,
    return
  }
  func.func @transform_0(%arg0: i32) -> (i32, i32) {
    %c0_i32 = arith.constant 0 : i32
    %c0_i32_0 = arith.constant 0 : i32
    return %arg0, %c0_i32 : i32, i32
  }
  func.func @transform_1(%arg0: i32) -> (i32, i32) {
    %c0_i32 = arith.constant 0 : i32
    %c0_i32_0 = arith.constant 0 : i32
    %c0_i32_1 = arith.constant 0 : i32
    return %c0_i32, %c0_i32_0 : i32, i32
  }
  func.func @transform_2(%arg0: i32) -> (i32, i32) {
    %c0_i32 = arith.constant 0 : i32
    %c0_i32_0 = arith.constant 0 : i32
    %c0_i32_1 = arith.constant 0 : i32
    return %c0_i32, %c0_i32_0 : i32, i32
  }
  func.func @transform_3(%arg0: i32) -> (i32, i32) {
    %c0_i32 = arith.constant 0 : i32
    %c0_i32_0 = arith.constant 0 : i32
    %c0_i32_1 = arith.constant 0 : i32
    return %c0_i32, %c0_i32_0 : i32, i32
  }
  func.func @transform_4(%arg0: i32) -> (i32, i32) {
    %c0_i32 = arith.constant 0 : i32
    %c0_i32_0 = arith.constant 0 : i32
    %c0_i32_1 = arith.constant 0 : i32
    return %c0_i32, %c0_i32_0 : i32, i32
  }
  func.func @transform_5(%arg0: i32) -> (i32, i32) {
    %c0_i32 = arith.constant 0 : i32
    %c0_i32_0 = arith.constant 0 : i32
    return %arg0, %c0_i32 : i32, i32
  }
}

</mosaic_0001>

<llo_original>
// kernel: generator_forward.1
$region0: #{generator_forward.1}
  #allocation0 [shape = 'u32[]', space=smem, size = 0x4, offset = 0x4, fixed_abs, tag = 'smem constant byte address 0x4 - core index']
  #allocation1 [shape = 'u32[144,128]{1,0:T(1,128)}', space=vmem, size = 0x12000, scoped, tag = 'internal scratch']
  %s0 = inlined_call_operand.vmem [shape: f32[16,64], index: 0, kind: input, shape index: {}]
  %s1 = inlined_call_operand.vmem [shape: f32[64,256], index: 1, kind: input, shape index: {}]
  %s2 = inlined_call_operand.vmem [shape: f32[1,256], index: 2, kind: input, shape index: {}]
  %s3 = inlined_call_operand.vmem [shape: bf16[256,784], index: 3, kind: input, shape index: {}]
  %s4 = inlined_call_operand.vmem [shape: f32[1,784], index: 4, kind: input, shape index: {}]
  %s5 = inlined_call_operand.vmem [shape: bf16[16,784], index: 5, kind: output, shape index: {}]
  %s6 = sld [smem:[#allocation0]]
  $region30: #{generator_forward.1} parent=0
    _
  %s8 = ssub.s32 1, %s6
  %s9 = scalar_select 0, %s8, %s6
  // Predicated region
  $region2: #{generator_forward.1} parent=0 // pred_check
    _
  $region3: #{generator_forward.1} parent=0 // pred_check_branch
    %11 = sbr.rel (0) target = $region5
  $region4: #{generator_forward.1} parent=0 // pred_region
    _
  $region5: #{generator_forward.1} parent=0 // pred_fallthru
    _
  // Predicated region
  $region6: #{generator_forward.1} parent=0 // pred_check
    _
  $region7: #{generator_forward.1} parent=0 // pred_check_branch
    %13 = sbr.rel (0) target = $region9
  $region8: #{generator_forward.1} parent=0 // pred_region
    _
  $region9: #{generator_forward.1} parent=0 // pred_fallthru
    _
  // Predicated region
  $region10: #{generator_forward.1} parent=0 // pred_check
    _
  $region11: #{generator_forward.1} parent=0 // pred_check_branch
    %15 = sbr.rel (0) target = $region13
  $region12: #{generator_forward.1} parent=0 // pred_region
    _
  $region13: #{generator_forward.1} parent=0 // pred_fallthru
    _
  // Predicated region
  $region14: #{generator_forward.1} parent=0 // pred_check
    _
  $region15: #{generator_forward.1} parent=0 // pred_check_branch
    %17 = sbr.rel (0) target = $region17
  $region16: #{generator_forward.1} parent=0 // pred_region
    _
  $region17: #{generator_forward.1} parent=0 // pred_fallthru
    _
  // Predicated region
  $region18: #{generator_forward.1} parent=0 // pred_check
    _
  $region19: #{generator_forward.1} parent=0 // pred_check_branch
    %19 = sbr.rel (0) target = $region21
  $region20: #{generator_forward.1} parent=0 // pred_region
    _
  $region21: #{generator_forward.1} parent=0 // pred_fallthru
    _
  %v21 = vld [vmem:[%s0] sm:$0xff]
  %v22 = vld [vmem:[%s0 + $0x8] sm:$0xff]
  %v23 = vld [vmem:[%s1] sm:$0xff]
  %v24 = vld [vmem:[%s1 + $0x8] sm:$0xff]
  %v25 = vld [vmem:[%s1 + $0x10] sm:$0xff]
  %v26 = vld [vmem:[%s1 + $0x18] sm:$0xff]
  %v27 = vld [vmem:[%s1 + $0x20] sm:$0xff]
  %v28 = vld [vmem:[%s1 + $0x28] sm:$0xff]
  %v29 = vld [vmem:[%s1 + $0x30] sm:$0xff]
  %v30 = vld [vmem:[%s1 + $0x38] sm:$0xff]
  %v31 = vld [vmem:[%s1 + $0x40] sm:$0xff]
  %v32 = vld [vmem:[%s1 + $0x48] sm:$0xff]
  %v33 = vld [vmem:[%s1 + $0x50] sm:$0xff]
  %v34 = vld [vmem:[%s1 + $0x58] sm:$0xff]
  %v35 = vld [vmem:[%s1 + $0x60] sm:$0xff]
  %v36 = vld [vmem:[%s1 + $0x68] sm:$0xff]
  %v37 = vld [vmem:[%s1 + $0x70] sm:$0xff]
  %v38 = vld [vmem:[%s1 + $0x78] sm:$0xff]
  %v39 = vld [vmem:[%s2] sm:$0x3]
  %v41 = vlaneseq
  %v42 = vshrl.u32 %v41, 7
  %v43 = vsub.s32 0, %v42
  %v44 = vrot.slane %v39, %v43
  %v45 = vlaneseq
  %v46 = vshrl.u32 %v45, 7
  %v47 = vsub.s32 1, %v46
  %v48 = vrot.slane %v39, %v47
  %vm51 = vcmask 523264
  %v53 = vsel %vm51, %v21, 0
  %v56 = vsel %vm51, %v22, 0
  %58 = vmatprep.subr.mxu0 %v24
  %59 = vmatpush1.msra.mxu0 %v23
  %60 = vmatprep.subr.mxu0 %v26
  %61 = vmatpush1.msra.mxu0 %v25
  %62 = vmatprep.subr.mxu0 %v28
  %63 = vmatpush1.msra.mxu0 %v27
  %64 = vmatprep.subr.mxu0 %v30
  %65 = vmatpush1.msra.mxu0 %v29
  %66 = vmatprep.subr.mxu0 %v32
  %67 = vmatpush1.msra.mxu0 %v31
  %68 = vmatprep.subr.mxu0 %v34
  %69 = vmatpush1.msra.mxu0 %v33
  %70 = vmatprep.subr.mxu0 %v36
  %71 = vmatpush1.msra.mxu0 %v35
  %72 = vmatprep.subr.mxu0 %v38
  %73 = vmatpush1.msra.mxu0 %v37
  %74 = vmatprep.subr.mxu0 0.0
  %75 = vmatpush1.msra.mxu0 0.0
  %76 = vmatprep.subr.mxu0 0.0
  %77 = vmatpush1.msra.mxu0 0.0
  %78 = vmatprep.subr.mxu0 0.0
  %79 = vmatpush1.msra.mxu0 0.0
  %80 = vmatprep.subr.mxu0 0.0
  %81 = vmatpush1.msra.mxu0 0.0
  %82 = vmatprep.subr.mxu0 0.0
  %83 = vmatpush1.msra.mxu0 0.0
  %84 = vmatprep.subr.mxu0 0.0
  %85 = vmatpush1.msra.mxu0 0.0
  %86 = vmatprep.subr.mxu0 0.0
  %87 = vmatpush1.msra.mxu0 0.0
  %88 = vmatprep.subr.mxu0 0.0
  %89 = vmatpush1.msra.mxu0 0.0
  %90 = vmatprep.subr.mxu0 0.0
  %91 = vmatpush1.msra.mxu0 0.0
  %92 = vmatprep.subr.mxu0 0.0
  %93 = vmatpush1.msra.mxu0 0.0
  %94 = vmatprep.subr.mxu0 0.0
  %95 = vmatpush1.msra.mxu0 0.0
  %96 = vmatprep.subr.mxu0 0.0
  %97 = vmatpush1.msra.mxu0 0.0
  %98 = vmatprep.subr.mxu0 0.0
  %99 = vmatpush1.msra.mxu0 0.0
  %100 = vmatprep.subr.mxu0 0.0
  %101 = vmatpush1.msra.mxu0 0.0
  %102 = vmatprep.subr.mxu0 0.0
  %103 = vmatpush1.msra.mxu0 0.0
  %104 = vmatprep.subr.mxu0 0.0
  %105 = vmatpush1.msra.mxu0 0.0
  %106 = vmatprep.subr.mxu0 0.0
  %107 = vmatpush1.msra.mxu0 0.0
  %108 = vmatprep.subr.mxu0 0.0
  %109 = vmatpush1.msra.mxu0 0.0
  %110 = vmatprep.subr.mxu0 0.0
  %111 = vmatpush1.msra.mxu0 0.0
  %112 = vmatprep.subr.mxu0 0.0
  %113 = vmatpush1.msra.mxu0 0.0
  %114 = vmatprep.subr.mxu0 0.0
  %115 = vmatpush1.msra.mxu0 0.0
  %116 = vmatprep.subr.mxu0 0.0
  %117 = vmatpush1.msra.mxu0 0.0
  %118 = vmatprep.subr.mxu0 0.0
  %119 = vmatpush1.msra.mxu0 0.0
  %120 = vmatprep.subr.mxu0 0.0
  %121 = vmatpush1.msra.mxu0 0.0
  %122 = vmatprep.mubr.f32.mxu0 0.0
  %123 = vmatmul.mubr.f32.gmra.mrb[0].mxu0 %v53
  %v124 = vpop.f32.mrb[0].mxu0
  %v125 = vadd.f32 %v44, %v124
  %v126 = vpop.f32.mrb[0].mxu0
  %v127 = vadd.f32 %v48, %v126
  %128 = vmatprep.mubr.f32.mxu0 0.0
  %129 = vmatmul.mubr.f32.gmra.mrb[0].mxu0 %v56
  %v130 = vpop.f32.mrb[0].mxu0
  %v131 = vadd.f32 %v44, %v130
  %v132 = vpop.f32.mrb[0].mxu0
  %v133 = vadd.f32 %v48, %v132
  %134 = vdwg.mxu0
  %v135 = vmul.f32 %v125, 0.1
  %v136 = vmul.f32 %v127, 0.1
  %v137 = vmul.f32 %v131, 0.1
  %v138 = vmul.f32 %v133, 0.1
  %v139 = vmax.f32 %v125, %v135
  %v140 = vmax.f32 %v127, %v136
  %v141 = vmax.f32 %v131, %v137
  %v142 = vmax.f32 %v133, %v138
  %v143 = vpack.c.bf16 %v141, %v139
  %v144 = vpack.c.bf16 %v142, %v140
  %v145 = vld [vmem:[%s3] sm:$0xff]
  %v146 = vld [vmem:[%s3 + $0x8] sm:$0xff]
  %v147 = vld [vmem:[%s3 + $0x10] sm:$0xff]
  %v148 = vld [vmem:[%s3 + $0x18] sm:$0xf]
  %v149 = vld [vmem:[%s3 + $0x1c] sm:$0xff]
  %v150 = vld [vmem:[%s3 + $0x24] sm:$0xff]
  %v151 = vld [vmem:[%s3 + $0x2c] sm:$0xff]
  %v152 = vld [vmem:[%s3 + $0x34] sm:$0xf]
  %v153 = vld [vmem:[%s3 + $0x38] sm:$0xff]
  %v154 = vld [vmem:[%s3 + $0x40] sm:$0xff]
  %v155 = vld [vmem:[%s3 + $0x48] sm:$0xff]
  %v156 = vld [vmem:[%s3 + $0x50] sm:$0xf]
  %v157 = vld [vmem:[%s3 + $0x54] sm:$0xff]
  %v158 = vld [vmem:[%s3 + $0x5c] sm:$0xff]
  %v159 = vld [vmem:[%s3 + $0x64] sm:$0xff]
  %v160 = vld [vmem:[%s3 + $0x6c] sm:$0xf]
  %v161 = vld [vmem:[%s3 + $0x70] sm:$0xff]
  %v162 = vld [vmem:[%s3 + $0x78] sm:$0xff]
  %v163 = vld [vmem:[%s3 + $0x80] sm:$0xff]
  %v164 = vld [vmem:[%s3 + $0x88] sm:$0xf]
  %v165 = vld [vmem:[%s3 + $0x8c] sm:$0xff]
  %v166 = vld [vmem:[%s3 + $0x94] sm:$0xff]
  %v167 = vld [vmem:[%s3 + $0x9c] sm:$0xff]
  %v168 = vld [vmem:[%s3 + $0xa4] sm:$0xf]
  %v169 = vld [vmem:[%s3 + $0xa8] sm:$0xff]
  %v170 = vld [vmem:[%s3 + $0xb0] sm:$0xff]
  %v171 = vld [vmem:[%s3 + $0xb8] sm:$0xff]
  %v172 = vld [vmem:[%s3 + $0xc0] sm:$0xf]
  %v173 = vld [vmem:[%s3 + $0xc4] sm:$0xff]
  %v174 = vld [vmem:[%s3 + $0xcc] sm:$0xff]
  %v175 = vld [vmem:[%s3 + $0xd4] sm:$0xff]
  %v176 = vld [vmem:[%s3 + $0xdc] sm:$0xf]
  %v177 = vld [vmem:[%s3 + $0xe0] sm:$0xff]
  %v178 = vld [vmem:[%s3 + $0xe8] sm:$0xff]
  %v179 = vld [vmem:[%s3 + $0xf0] sm:$0xff]
  %v180 = vld [vmem:[%s3 + $0xf8] sm:$0xf]
  %v181 = vld [vmem:[%s3 + $0xfc] sm:$0xff]
  %v182 = vld [vmem:[%s3 + $0x104] sm:$0xff]
  %v183 = vld [vmem:[%s3 + $0x10c] sm:$0xff]
  %v184 = vld [vmem:[%s3 + $0x114] sm:$0xf]
  %v185 = vld [vmem:[%s3 + $0x118] sm:$0xff]
  %v186 = vld [vmem:[%s3 + $0x120] sm:$0xff]
  %v187 = vld [vmem:[%s3 + $0x128] sm:$0xff]
  %v188 = vld [vmem:[%s3 + $0x130] sm:$0xf]
  %v189 = vld [vmem:[%s3 + $0x134] sm:$0xff]
  %v190 = vld [vmem:[%s3 + $0x13c] sm:$0xff]
  %v191 = vld [vmem:[%s3 + $0x144] sm:$0xff]
  %v192 = vld [vmem:[%s3 + $0x14c] sm:$0xf]
  %v193 = vld [vmem:[%s3 + $0x150] sm:$0xff]
  %v194 = vld [vmem:[%s3 + $0x158] sm:$0xff]
  %v195 = vld [vmem:[%s3 + $0x160] sm:$0xff]
  %v196 = vld [vmem:[%s3 + $0x168] sm:$0xf]
  %v197 = vld [vmem:[%s3 + $0x16c] sm:$0xff]
  %v198 = vld [vmem:[%s3 + $0x174] sm:$0xff]
  %v199 = vld [vmem:[%s3 + $0x17c] sm:$0xff]
  %v200 = vld [vmem:[%s3 + $0x184] sm:$0xf]
  %v201 = vld [vmem:[%s3 + $0x188] sm:$0xff]
  %v202 = vld [vmem:[%s3 + $0x190] sm:$0xff]
  %v203 = vld [vmem:[%s3 + $0x198] sm:$0xff]
  %v204 = vld [vmem:[%s3 + $0x1a0] sm:$0xf]
  %v205 = vld [vmem:[%s3 + $0x1a4] sm:$0xff]
  %v206 = vld [vmem:[%s3 + $0x1ac] sm:$0xff]
  %v207 = vld [vmem:[%s3 + $0x1b4] sm:$0xff]
  %v208 = vld [vmem:[%s3 + $0x1bc] sm:$0xf]
  %v209 = vld [vmem:[%s3 + $0x1c0] sm:$0xff]
  %v210 = vld [vmem:[%s3 + $0x1c8] sm:$0xff]
  %v211 = vld [vmem:[%s3 + $0x1d0] sm:$0xff]
  %v212 = vld [vmem:[%s3 + $0x1d8] sm:$0xf]
  %v213 = vld [vmem:[%s3 + $0x1dc] sm:$0xff]
  %v214 = vld [vmem:[%s3 + $0x1e4] sm:$0xff]
  %v215 = vld [vmem:[%s3 + $0x1ec] sm:$0xff]
  %v216 = vld [vmem:[%s3 + $0x1f4] sm:$0xf]
  %v217 = vld [vmem:[%s3 + $0x1f8] sm:$0xff]
  %v218 = vld [vmem:[%s3 + $0x200] sm:$0xff]
  %v219 = vld [vmem:[%s3 + $0x208] sm:$0xff]
  %v220 = vld [vmem:[%s3 + $0x210] sm:$0xf]
  %v221 = vld [vmem:[%s3 + $0x214] sm:$0xff]
  %v222 = vld [vmem:[%s3 + $0x21c] sm:$0xff]
  %v223 = vld [vmem:[%s3 + $0x224] sm:$0xff]
  %v224 = vld [vmem:[%s3 + $0x22c] sm:$0xf]
  %v225 = vld [vmem:[%s3 + $0x230] sm:$0xff]
  %v226 = vld [vmem:[%s3 + $0x238] sm:$0xff]
  %v227 = vld [vmem:[%s3 + $0x240] sm:$0xff]
  %v228 = vld [vmem:[%s3 + $0x248] sm:$0xf]
  %v229 = vld [vmem:[%s3 + $0x24c] sm:$0xff]
  %v230 = vld [vmem:[%s3 + $0x254] sm:$0xff]
  %v231 = vld [vmem:[%s3 + $0x25c] sm:$0xff]
  %v232 = vld [vmem:[%s3 + $0x264] sm:$0xf]
  %v233 = vld [vmem:[%s3 + $0x268] sm:$0xff]
  %v234 = vld [vmem:[%s3 + $0x270] sm:$0xff]
  %v235 = vld [vmem:[%s3 + $0x278] sm:$0xff]
  %v236 = vld [vmem:[%s3 + $0x280] sm:$0xf]
  %v237 = vld [vmem:[%s3 + $0x284] sm:$0xff]
  %v238 = vld [vmem:[%s3 + $0x28c] sm:$0xff]
  %v239 = vld [vmem:[%s3 + $0x294] sm:$0xff]
  %v240 = vld [vmem:[%s3 + $0x29c] sm:$0xf]
  %v241 = vld [vmem:[%s3 + $0x2a0] sm:$0xff]
  %v242 = vld [vmem:[%s3 + $0x2a8] sm:$0xff]
  %v243 = vld [vmem:[%s3 + $0x2b0] sm:$0xff]
  %v244 = vld [vmem:[%s3 + $0x2b8] sm:$0xf]
  %v245 = vld [vmem:[%s3 + $0x2bc] sm:$0xff]
  %v246 = vld [vmem:[%s3 + $0x2c4] sm:$0xff]
  %v247 = vld [vmem:[%s3 + $0x2cc] sm:$0xff]
  %v248 = vld [vmem:[%s3 + $0x2d4] sm:$0xf]
  %v249 = vld [vmem:[%s3 + $0x2d8] sm:$0xff]
  %v250 = vld [vmem:[%s3 + $0x2e0] sm:$0xff]
  %v251 = vld [vmem:[%s3 + $0x2e8] sm:$0xff]
  %v252 = vld [vmem:[%s3 + $0x2f0] sm:$0xf]
  %v253 = vld [vmem:[%s3 + $0x2f4] sm:$0xff]
  %v254 = vld [vmem:[%s3 + $0x2fc] sm:$0xff]
  %v255 = vld [vmem:[%s3 + $0x304] sm:$0xff]
  %v256 = vld [vmem:[%s3 + $0x30c] sm:$0xf]
  %v257 = vld [vmem:[%s3 + $0x310] sm:$0xff]
  %v258 = vld [vmem:[%s3 + $0x318] sm:$0xff]
  %v259 = vld [vmem:[%s3 + $0x320] sm:$0xff]
  %v260 = vld [vmem:[%s3 + $0x328] sm:$0xf]
  %v261 = vld [vmem:[%s3 + $0x32c] sm:$0xff]
  %v262 = vld [vmem:[%s3 + $0x334] sm:$0xff]
  %v263 = vld [vmem:[%s3 + $0x33c] sm:$0xff]
  %v264 = vld [vmem:[%s3 + $0x344] sm:$0xf]
  %v265 = vld [vmem:[%s3 + $0x348] sm:$0xff]
  %v266 = vld [vmem:[%s3 + $0x350] sm:$0xff]
  %v267 = vld [vmem:[%s3 + $0x358] sm:$0xff]
  %v268 = vld [vmem:[%s3 + $0x360] sm:$0xf]
  %v269 = vld [vmem:[%s3 + $0x364] sm:$0xff]
  %v270 = vld [vmem:[%s3 + $0x36c] sm:$0xff]
  %v271 = vld [vmem:[%s3 + $0x374] sm:$0xff]
  %v272 = vld [vmem:[%s3 + $0x37c] sm:$0xf]
  %v273 = vld [vmem:[%s4] sm:$0x7f]
  %v275 = vlaneseq
  %v276 = vshrl.u32 %v275, 7
  %v277 = vsub.s32 0, %v276
  %v278 = vrot.slane %v273, %v277
  %v279 = vlaneseq
  %v280 = vshrl.u32 %v279, 7
  %v281 = vsub.s32 1, %v280
  %v282 = vrot.slane %v273, %v281
  %v283 = vlaneseq
  %v284 = vshrl.u32 %v283, 7
  %v285 = vsub.s32 2, %v284
  %v286 = vrot.slane %v273, %v285
  %v287 = vlaneseq
  %v288 = vshrl.u32 %v287, 7
  %v289 = vsub.s32 3, %v288
  %v290 = vrot.slane %v273, %v289
  %v291 = vlaneseq
  %v292 = vshrl.u32 %v291, 7
  %v293 = vsub.s32 4, %v292
  %v294 = vrot.slane %v273, %v293
  %v295 = vlaneseq
  %v296 = vshrl.u32 %v295, 7
  %v297 = vsub.s32 5, %v296
  %v298 = vrot.slane %v273, %v297
  %v299 = vlaneseq
  %v300 = vshrl.u32 %v299, 7
  %v301 = vsub.s32 6, %v300
  %v302 = vrot.slane %v273, %v301
  %v438 = vunpack.c.l.b16 %v145
  %v439 = vunpack.c.h.b16 %v145
  %v440 = vunpack.c.l.b16 %v146
  %v441 = vunpack.c.h.b16 %v146
  %v442 = vunpack.c.l.b16 %v147
  %v443 = vunpack.c.h.b16 %v147
  %v444 = vunpack.c.l.b16 %v148
  %v445 = vunpack.c.l.b16 %v149
  %v446 = vunpack.c.h.b16 %v149
  %v447 = vunpack.c.l.b16 %v150
  %v448 = vunpack.c.h.b16 %v150
  %v449 = vunpack.c.l.b16 %v151
  %v450 = vunpack.c.h.b16 %v151
  %v451 = vunpack.c.l.b16 %v152
  %v452 = vunpack.c.l.b16 %v153
  %v453 = vunpack.c.h.b16 %v153
  %v454 = vunpack.c.l.b16 %v154
  %v455 = vunpack.c.h.b16 %v154
  %v456 = vunpack.c.l.b16 %v155
  %v457 = vunpack.c.h.b16 %v155
  %v458 = vunpack.c.l.b16 %v156
  %v459 = vunpack.c.l.b16 %v157
  %v460 = vunpack.c.h.b16 %v157
  %v461 = vunpack.c.l.b16 %v158
  %v462 = vunpack.c.h.b16 %v158
  %v463 = vunpack.c.l.b16 %v159
  %v464 = vunpack.c.h.b16 %v159
  %v465 = vunpack.c.l.b16 %v160
  %v466 = vunpack.c.l.b16 %v161
  %v467 = vunpack.c.h.b16 %v161
  %v468 = vunpack.c.l.b16 %v162
  %v469 = vunpack.c.h.b16 %v162
  %v470 = vunpack.c.l.b16 %v163
  %v471 = vunpack.c.h.b16 %v163
  %v472 = vunpack.c.l.b16 %v164
  %v473 = vunpack.c.l.b16 %v165
  %v474 = vunpack.c.h.b16 %v165
  %v475 = vunpack.c.l.b16 %v166
  %v476 = vunpack.c.h.b16 %v166
  %v477 = vunpack.c.l.b16 %v167
  %v478 = vunpack.c.h.b16 %v167
  %v479 = vunpack.c.l.b16 %v168
  %v480 = vunpack.c.l.b16 %v169
  %v481 = vunpack.c.h.b16 %v169
  %v482 = vunpack.c.l.b16 %v170
  %v483 = vunpack.c.h.b16 %v170
  %v484 = vunpack.c.l.b16 %v171
  %v485 = vunpack.c.h.b16 %v171
  %v486 = vunpack.c.l.b16 %v172
  %v487 = vunpack.c.l.b16 %v173
  %v488 = vunpack.c.h.b16 %v173
  %v489 = vunpack.c.l.b16 %v174
  %v490 = vunpack.c.h.b16 %v174
  %v491 = vunpack.c.l.b16 %v175
  %v492 = vunpack.c.h.b16 %v175
  %v493 = vunpack.c.l.b16 %v176
  %v494 = vunpack.c.l.b16 %v177
  %v495 = vunpack.c.h.b16 %v177
  %v496 = vunpack.c.l.b16 %v178
  %v497 = vunpack.c.h.b16 %v178
  %v498 = vunpack.c.l.b16 %v179
  %v499 = vunpack.c.h.b16 %v179
  %v500 = vunpack.c.l.b16 %v180
  %v501 = vunpack.c.l.b16 %v181
  %v502 = vunpack.c.h.b16 %v181
  %v503 = vunpack.c.l.b16 %v182
  %v504 = vunpack.c.h.b16 %v182
  %v505 = vunpack.c.l.b16 %v183
  %v506 = vunpack.c.h.b16 %v183
  %v507 = vunpack.c.l.b16 %v184
  %v508 = vunpack.c.l.b16 %v185
  %v509 = vunpack.c.h.b16 %v185
  %v510 = vunpack.c.l.b16 %v186
  %v511 = vunpack.c.h.b16 %v186
  %v512 = vunpack.c.l.b16 %v187
  %v513 = vunpack.c.h.b16 %v187
  %v514 = vunpack.c.l.b16 %v188
  %v515 = vunpack.c.l.b16 %v189
  %v516 = vunpack.c.h.b16 %v189
  %v517 = vunpack.c.l.b16 %v190
  %v518 = vunpack.c.h.b16 %v190
  %v519 = vunpack.c.l.b16 %v191
  %v520 = vunpack.c.h.b16 %v191
  %v521 = vunpack.c.l.b16 %v192
  %v522 = vunpack.c.l.b16 %v193
  %v523 = vunpack.c.h.b16 %v193
  %v524 = vunpack.c.l.b16 %v194
  %v525 = vunpack.c.h.b16 %v194
  %v526 = vunpack.c.l.b16 %v195
  %v527 = vunpack.c.h.b16 %v195
  %v528 = vunpack.c.l.b16 %v196
  %v529 = vunpack.c.l.b16 %v197
  %v530 = vunpack.c.h.b16 %v197
  %v531 = vunpack.c.l.b16 %v198
  %v532 = vunpack.c.h.b16 %v198
  %v533 = vunpack.c.l.b16 %v199
  %v534 = vunpack.c.h.b16 %v199
  %v535 = vunpack.c.l.b16 %v200
  %v536 = vunpack.c.l.b16 %v201
  %v537 = vunpack.c.h.b16 %v201
  %v538 = vunpack.c.l.b16 %v202
  %v539 = vunpack.c.h.b16 %v202
  %v540 = vunpack.c.l.b16 %v203
  %v541 = vunpack.c.h.b16 %v203
  %v542 = vunpack.c.l.b16 %v204
  %v543 = vunpack.c.l.b16 %v205
  %v544 = vunpack.c.h.b16 %v205
  %v545 = vunpack.c.l.b16 %v206
  %v546 = vunpack.c.h.b16 %v206
  %v547 = vunpack.c.l.b16 %v207
  %v548 = vunpack.c.h.b16 %v207
  %v549 = vunpack.c.l.b16 %v208
  %v550 = vunpack.c.l.b16 %v209
  %v551 = vunpack.c.h.b16 %v209
  %v552 = vunpack.c.l.b16 %v210
  %v553 = vunpack.c.h.b16 %v210
  %v554 = vunpack.c.l.b16 %v211
  %v555 = vunpack.c.h.b16 %v211
  %v556 = vunpack.c.l.b16 %v212
  %v557 = vunpack.c.l.b16 %v213
  %v558 = vunpack.c.h.b16 %v213
  %v559 = vunpack.c.l.b16 %v214
  %v560 = vunpack.c.h.b16 %v214
  %v561 = vunpack.c.l.b16 %v215
  %v562 = vunpack.c.h.b16 %v215
  %v563 = vunpack.c.l.b16 %v216
  %v564 = vunpack.c.l.b16 %v217
  %v565 = vunpack.c.h.b16 %v217
  %v566 = vunpack.c.l.b16 %v218
  %v567 = vunpack.c.h.b16 %v218
  %v568 = vunpack.c.l.b16 %v219
  %v569 = vunpack.c.h.b16 %v219
  %v570 = vunpack.c.l.b16 %v220
  %v571 = vunpack.c.l.b16 %v221
  %v572 = vunpack.c.h.b16 %v221
  %v573 = vunpack.c.l.b16 %v222
  %v574 = vunpack.c.h.b16 %v222
  %v575 = vunpack.c.l.b16 %v223
  %v576 = vunpack.c.h.b16 %v223
  %v577 = vunpack.c.l.b16 %v224
  %v578 = vunpack.c.l.b16 %v225
  %v579 = vunpack.c.h.b16 %v225
  %v580 = vunpack.c.l.b16 %v226
  %v581 = vunpack.c.h.b16 %v226
  %v582 = vunpack.c.l.b16 %v227
  %v583 = vunpack.c.h.b16 %v227
  %v584 = vunpack.c.l.b16 %v228
  %v585 = vunpack.c.l.b16 %v229
  %v586 = vunpack.c.h.b16 %v229
  %v587 = vunpack.c.l.b16 %v230
  %v588 = vunpack.c.h.b16 %v230
  %v589 = vunpack.c.l.b16 %v231
  %v590 = vunpack.c.h.b16 %v231
  %v591 = vunpack.c.l.b16 %v232
  %v592 = vunpack.c.l.b16 %v233
  %v593 = vunpack.c.h.b16 %v233
  %v594 = vunpack.c.l.b16 %v234
  %v595 = vunpack.c.h.b16 %v234
  %v596 = vunpack.c.l.b16 %v235
  %v597 = vunpack.c.h.b16 %v235
  %v598 = vunpack.c.l.b16 %v236
  %v599 = vunpack.c.l.b16 %v237
  %v600 = vunpack.c.h.b16 %v237
  %v601 = vunpack.c.l.b16 %v238
  %v602 = vunpack.c.h.b16 %v238
  %v603 = vunpack.c.l.b16 %v239
  %v604 = vunpack.c.h.b16 %v239
  %v605 = vunpack.c.l.b16 %v240
  %v606 = vunpack.c.l.b16 %v241
  %v607 = vunpack.c.h.b16 %v241
  %v608 = vunpack.c.l.b16 %v242
  %v609 = vunpack.c.h.b16 %v242
  %v610 = vunpack.c.l.b16 %v243
  %v611 = vunpack.c.h.b16 %v243
  %v612 = vunpack.c.l.b16 %v244
  %v613 = vunpack.c.l.b16 %v245
  %v614 = vunpack.c.h.b16 %v245
  %v615 = vunpack.c.l.b16 %v246
  %v616 = vunpack.c.h.b16 %v246
  %v617 = vunpack.c.l.b16 %v247
  %v618 = vunpack.c.h.b16 %v247
  %v619 = vunpack.c.l.b16 %v248
  %v620 = vunpack.c.l.b16 %v249
  %v621 = vunpack.c.h.b16 %v249
  %v622 = vunpack.c.l.b16 %v250
  %v623 = vunpack.c.h.b16 %v250
  %v624 = vunpack.c.l.b16 %v251
  %v625 = vunpack.c.h.b16 %v251
  %v626 = vunpack.c.l.b16 %v252
  %v627 = vunpack.c.l.b16 %v253
  %v628 = vunpack.c.h.b16 %v253
  %v629 = vunpack.c.l.b16 %v254
  %v630 = vunpack.c.h.b16 %v254
  %v631 = vunpack.c.l.b16 %v255
  %v632 = vunpack.c.h.b16 %v255
  %v633 = vunpack.c.l.b16 %v256
  %v634 = vunpack.c.l.b16 %v257
  %v635 = vunpack.c.h.b16 %v257
  %v636 = vunpack.c.l.b16 %v258
  %v637 = vunpack.c.h.b16 %v258
  %v638 = vunpack.c.l.b16 %v259
  %v639 = vunpack.c.h.b16 %v259
  %v640 = vunpack.c.l.b16 %v260
  %v641 = vunpack.c.l.b16 %v261
  %v642 = vunpack.c.h.b16 %v261
  %v643 = vunpack.c.l.b16 %v262
  %v644 = vunpack.c.h.b16 %v262
  %v645 = vunpack.c.l.b16 %v263
  %v646 = vunpack.c.h.b16 %v263
  %v647 = vunpack.c.l.b16 %v264
  %v648 = vunpack.c.l.b16 %v265
  %v649 = vunpack.c.h.b16 %v265
  %v650 = vunpack.c.l.b16 %v266
  %v651 = vunpack.c.h.b16 %v266
  %v652 = vunpack.c.l.b16 %v267
  %v653 = vunpack.c.h.b16 %v267
  %v654 = vunpack.c.l.b16 %v268
  %v655 = vunpack.c.l.b16 %v269
  %v656 = vunpack.c.h.b16 %v269
  %v657 = vunpack.c.l.b16 %v270
  %v658 = vunpack.c.h.b16 %v270
  %v659 = vunpack.c.l.b16 %v271
  %v660 = vunpack.c.h.b16 %v271
  %v661 = vunpack.c.l.b16 %v272
  %v662 = vpack.c.b16 %v445, %v438
  %v663 = vpack.c.b16 %v446, %v439
  %v664 = vpack.c.b16 %v447, %v440
  %v665 = vpack.c.b16 %v448, %v441
  %v666 = vpack.c.b16 %v449, %v442
  %v667 = vpack.c.b16 %v450, %v443
  %v668 = vpack.c.b16 %v451, %v444
  %v669 = vpack.c.b16 %v459, %v452
  %v670 = vpack.c.b16 %v460, %v453
  %v671 = vpack.c.b16 %v461, %v454
  %v672 = vpack.c.b16 %v462, %v455
  %v673 = vpack.c.b16 %v463, %v456
  %v674 = vpack.c.b16 %v464, %v457
  %v675 = vpack.c.b16 %v465, %v458
  %v676 = vpack.c.b16 %v473, %v466
  %v677 = vpack.c.b16 %v474, %v467
  %v678 = vpack.c.b16 %v475, %v468
  %v679 = vpack.c.b16 %v476, %v469
  %v680 = vpack.c.b16 %v477, %v470
  %v681 = vpack.c.b16 %v478, %v471
  %v682 = vpack.c.b16 %v479, %v472
  %v683 = vpack.c.b16 %v487, %v480
  %v684 = vpack.c.b16 %v488, %v481
  %v685 = vpack.c.b16 %v489, %v482
  %v686 = vpack.c.b16 %v490, %v483
  %v687 = vpack.c.b16 %v491, %v484
  %v688 = vpack.c.b16 %v492, %v485
  %v689 = vpack.c.b16 %v493, %v486
  %v690 = vpack.c.b16 %v501, %v494
  %v691 = vpack.c.b16 %v502, %v495
  %v692 = vpack.c.b16 %v503, %v496
  %v693 = vpack.c.b16 %v504, %v497
  %v694 = vpack.c.b16 %v505, %v498
  %v695 = vpack.c.b16 %v506, %v499
  %v696 = vpack.c.b16 %v507, %v500
  %v697 = vpack.c.b16 %v515, %v508
  %v698 = vpack.c.b16 %v516, %v509
  %v699 = vpack.c.b16 %v517, %v510
  %v700 = vpack.c.b16 %v518, %v511
  %v701 = vpack.c.b16 %v519, %v512
  %v702 = vpack.c.b16 %v520, %v513
  %v703 = vpack.c.b16 %v521, %v514
  %v704 = vpack.c.b16 %v529, %v522
  %v705 = vpack.c.b16 %v530, %v523
  %v706 = vpack.c.b16 %v531, %v524
  %v707 = vpack.c.b16 %v532, %v525
  %v708 = vpack.c.b16 %v533, %v526
  %v709 = vpack.c.b16 %v534, %v527
  %v710 = vpack.c.b16 %v535, %v528
  %v711 = vpack.c.b16 %v543, %v536
  %v712 = vpack.c.b16 %v544, %v537
  %v713 = vpack.c.b16 %v545, %v538
  %v714 = vpack.c.b16 %v546, %v539
  %v715 = vpack.c.b16 %v547, %v540
  %v716 = vpack.c.b16 %v548, %v541
  %v717 = vpack.c.b16 %v549, %v542
  %v718 = vpack.c.b16 %v557, %v550
  %v719 = vpack.c.b16 %v558, %v551
  %v720 = vpack.c.b16 %v559, %v552
  %v721 = vpack.c.b16 %v560, %v553
  %v722 = vpack.c.b16 %v561, %v554
  %v723 = vpack.c.b16 %v562, %v555
  %v724 = vpack.c.b16 %v563, %v556
  %v725 = vpack.c.b16 %v571, %v564
  %v726 = vpack.c.b16 %v572, %v565
  %v727 = vpack.c.b16 %v573, %v566
  %v728 = vpack.c.b16 %v574, %v567
  %v729 = vpack.c.b16 %v575, %v568
  %v730 = vpack.c.b16 %v576, %v569
  %v731 = vpack.c.b16 %v577, %v570
  %v732 = vpack.c.b16 %v585, %v578
  %v733 = vpack.c.b16 %v586, %v579
  %v734 = vpack.c.b16 %v587, %v580
  %v735 = vpack.c.b16 %v588, %v581
  %v736 = vpack.c.b16 %v589, %v582
  %v737 = vpack.c.b16 %v590, %v583
  %v738 = vpack.c.b16 %v591, %v584
  %v739 = vpack.c.b16 %v599, %v592
  %v740 = vpack.c.b16 %v600, %v593
  %v741 = vpack.c.b16 %v601, %v594
  %v742 = vpack.c.b16 %v602, %v595
  %v743 = vpack.c.b16 %v603, %v596
  %v744 = vpack.c.b16 %v604, %v597
  %v745 = vpack.c.b16 %v605, %v598
  %v746 = vpack.c.b16 %v613, %v606
  %v747 = vpack.c.b16 %v614, %v607
  %v748 = vpack.c.b16 %v615, %v608
  %v749 = vpack.c.b16 %v616, %v609
  %v750 = vpack.c.b16 %v617, %v610
  %v751 = vpack.c.b16 %v618, %v611
  %v752 = vpack.c.b16 %v619, %v612
  %v753 = vpack.c.b16 %v627, %v620
  %v754 = vpack.c.b16 %v628, %v621
  %v755 = vpack.c.b16 %v629, %v622
  %v756 = vpack.c.b16 %v630, %v623
  %v757 = vpack.c.b16 %v631, %v624
  %v758 = vpack.c.b16 %v632, %v625
  %v759 = vpack.c.b16 %v633, %v626
  %v760 = vpack.c.b16 %v641, %v634
  %v761 = vpack.c.b16 %v642, %v635
  %v762 = vpack.c.b16 %v643, %v636
  %v763 = vpack.c.b16 %v644, %v637
  %v764 = vpack.c.b16 %v645, %v638
  %v765 = vpack.c.b16 %v646, %v639
  %v766 = vpack.c.b16 %v647, %v640
  %v767 = vpack.c.b16 %v655, %v648
  %v768 = vpack.c.b16 %v656, %v649
  %v769 = vpack.c.b16 %v657, %v650
  %v770 = vpack.c.b16 %v658, %v651
  %v771 = vpack.c.b16 %v659, %v652
  %v772 = vpack.c.b16 %v660, %v653
  %v773 = vpack.c.b16 %v661, %v654
  %886 = vmatprep.subr.bf16.mxu0 %v663
  %887 = vmatpush1.bf16.msra.mxu0 %v662
  %888 = vmatprep.subr.bf16.mxu0 %v670
  %889 = vmatpush1.bf16.msra.mxu0 %v669
  %890 = vmatprep.subr.bf16.mxu0 %v677
  %891 = vmatpush1.bf16.msra.mxu0 %v676
  %892 = vmatprep.subr.bf16.mxu0 %v684
  %893 = vmatpush1.bf16.msra.mxu0 %v683
  %894 = vmatprep.subr.bf16.mxu0 %v691
  %895 = vmatpush1.bf16.msra.mxu0 %v690
  %896 = vmatprep.subr.bf16.mxu0 %v698
  %897 = vmatpush1.bf16.msra.mxu0 %v697
  %898 = vmatprep.subr.bf16.mxu0 %v705
  %899 = vmatpush1.bf16.msra.mxu0 %v704
  %900 = vmatprep.subr.bf16.mxu0 %v712
  %901 = vmatpush1.bf16.msra.mxu0 %v711
  %902 = vmatprep.subr.bf16.mxu0 %v719
  %903 = vmatpush1.bf16.msra.mxu0 %v718
  %904 = vmatprep.subr.bf16.mxu0 %v726
  %905 = vmatpush1.bf16.msra.mxu0 %v725
  %906 = vmatprep.subr.bf16.mxu0 %v733
  %907 = vmatpush1.bf16.msra.mxu0 %v732
  %908 = vmatprep.subr.bf16.mxu0 %v740
  %909 = vmatpush1.bf16.msra.mxu0 %v739
  %910 = vmatprep.subr.bf16.mxu0 %v747
  %911 = vmatpush1.bf16.msra.mxu0 %v746
  %912 = vmatprep.subr.bf16.mxu0 %v754
  %913 = vmatpush1.bf16.msra.mxu0 %v753
  %914 = vmatprep.subr.bf16.mxu0 %v761
  %915 = vmatpush1.bf16.msra.mxu0 %v760
  %916 = vmatprep.subr.bf16.mxu0 %v768
  %917 = vmatpush1.bf16.msra.mxu0 %v767
  %918 = vmatprep.mubr.bf16.mxu0 %v144
  %919 = vmatmul.mubr.bf16.gmra.mrb[0].mxu0 %v143
  %v920 = vpop.f32.mrb[0].mxu0
  %v921 = vadd.f32 %v278, %v920
  %v922 = vpop.f32.mrb[0].mxu0
  %v923 = vadd.f32 %v282, %v922
  %v924 = vpop.f32.mrb[0].mxu0
  %v925 = vadd.f32 %v278, %v924
  %v926 = vpop.f32.mrb[0].mxu0
  %v927 = vadd.f32 %v282, %v926
  %928 = vdwg.mxu0
  %929 = vmatprep.subr.bf16.mxu0 %v665
  %930 = vmatpush1.bf16.msra.mxu0 %v664
  %931 = vmatprep.subr.bf16.mxu0 %v672
  %932 = vmatpush1.bf16.msra.mxu0 %v671
  %933 = vmatprep.subr.bf16.mxu0 %v679
  %934 = vmatpush1.bf16.msra.mxu0 %v678
  %935 = vmatprep.subr.bf16.mxu0 %v686
  %936 = vmatpush1.bf16.msra.mxu0 %v685
  %937 = vmatprep.subr.bf16.mxu0 %v693
  %938 = vmatpush1.bf16.msra.mxu0 %v692
  %939 = vmatprep.subr.bf16.mxu0 %v700
  %940 = vmatpush1.bf16.msra.mxu0 %v699
  %941 = vmatprep.subr.bf16.mxu0 %v707
  %942 = vmatpush1.bf16.msra.mxu0 %v706
  %943 = vmatprep.subr.bf16.mxu0 %v714
  %944 = vmatpush1.bf16.msra.mxu0 %v713
  %945 = vmatprep.subr.bf16.mxu0 %v721
  %946 = vmatpush1.bf16.msra.mxu0 %v720
  %947 = vmatprep.subr.bf16.mxu0 %v728
  %948 = vmatpush1.bf16.msra.mxu0 %v727
  %949 = vmatprep.subr.bf16.mxu0 %v735
  %950 = vmatpush1.bf16.msra.mxu0 %v734
  %951 = vmatprep.subr.bf16.mxu0 %v742
  %952 = vmatpush1.bf16.msra.mxu0 %v741
  %953 = vmatprep.subr.bf16.mxu0 %v749
  %954 = vmatpush1.bf16.msra.mxu0 %v748
  %955 = vmatprep.subr.bf16.mxu0 %v756
  %956 = vmatpush1.bf16.msra.mxu0 %v755
  %957 = vmatprep.subr.bf16.mxu0 %v763
  %958 = vmatpush1.bf16.msra.mxu0 %v762
  %959 = vmatprep.subr.bf16.mxu0 %v770
  %960 = vmatpush1.bf16.msra.mxu0 %v769
  %961 = vmatprep.mubr.bf16.mxu0 %v144
  %962 = vmatmul.mubr.bf16.gmra.mrb[0].mxu0 %v143
  %v963 = vpop.f32.mrb[0].mxu0
  %v964 = vadd.f32 %v286, %v963
  %v965 = vpop.f32.mrb[0].mxu0
  %v966 = vadd.f32 %v290, %v965
  %v967 = vpop.f32.mrb[0].mxu0
  %v968 = vadd.f32 %v286, %v967
  %v969 = vpop.f32.mrb[0].mxu0
  %v970 = vadd.f32 %v290, %v969
  %971 = vdwg.mxu0
  %972 = vmatprep.subr.bf16.mxu0 %v667
  %973 = vmatpush1.bf16.msra.mxu0 %v666
  %974 = vmatprep.subr.bf16.mxu0 %v674
  %975 = vmatpush1.bf16.msra.mxu0 %v673
  %976 = vmatprep.subr.bf16.mxu0 %v681
  %977 = vmatpush1.bf16.msra.mxu0 %v680
  %978 = vmatprep.subr.bf16.mxu0 %v688
  %979 = vmatpush1.bf16.msra.mxu0 %v687
  %980 = vmatprep.subr.bf16.mxu0 %v695
  %981 = vmatpush1.bf16.msra.mxu0 %v694
  %982 = vmatprep.subr.bf16.mxu0 %v702
  %983 = vmatpush1.bf16.msra.mxu0 %v701
  %984 = vmatprep.subr.bf16.mxu0 %v709
  %985 = vmatpush1.bf16.msra.mxu0 %v708
  %986 = vmatprep.subr.bf16.mxu0 %v716
  %987 = vmatpush1.bf16.msra.mxu0 %v715
  %988 = vmatprep.subr.bf16.mxu0 %v723
  %989 = vmatpush1.bf16.msra.mxu0 %v722
  %990 = vmatprep.subr.bf16.mxu0 %v730
  %991 = vmatpush1.bf16.msra.mxu0 %v729
  %992 = vmatprep.subr.bf16.mxu0 %v737
  %993 = vmatpush1.bf16.msra.mxu0 %v736
  %994 = vmatprep.subr.bf16.mxu0 %v744
  %995 = vmatpush1.bf16.msra.mxu0 %v743
  %996 = vmatprep.subr.bf16.mxu0 %v751
  %997 = vmatpush1.bf16.msra.mxu0 %v750
  %998 = vmatprep.subr.bf16.mxu0 %v758
  %999 = vmatpush1.bf16.msra.mxu0 %v757
  %1000 = vmatprep.subr.bf16.mxu0 %v765
  %1001 = vmatpush1.bf16.msra.mxu0 %v764
  %1002 = vmatprep.subr.bf16.mxu0 %v772
  %1003 = vmatpush1.bf16.msra.mxu0 %v771
  %1004 = vmatprep.mubr.bf16.mxu0 %v144
  %1005 = vmatmul.mubr.bf16.gmra.mrb[0].mxu0 %v143
  %v1006 = vpop.f32.mrb[0].mxu0
  %v1007 = vadd.f32 %v294, %v1006
  %v1008 = vpop.f32.mrb[0].mxu0
  %v1009 = vadd.f32 %v298, %v1008
  %v1010 = vpop.f32.mrb[0].mxu0
  %v1011 = vadd.f32 %v294, %v1010
  %v1012 = vpop.f32.mrb[0].mxu0
  %v1013 = vadd.f32 %v298, %v1012
  %1014 = vdwg.mxu0
  %1015 = vmatprep.subr.bf16.mxu0 0
  %1016 = vmatpush1.bf16.msra.mxu0 %v668
  %1017 = vmatprep.subr.bf16.mxu0 0
  %1018 = vmatpush1.bf16.msra.mxu0 %v675
  %1019 = vmatprep.subr.bf16.mxu0 0
  %1020 = vmatpush1.bf16.msra.mxu0 %v682
  %1021 = vmatprep.subr.bf16.mxu0 0
  %1022 = vmatpush1.bf16.msra.mxu0 %v689
  %1023 = vmatprep.subr.bf16.mxu0 0
  %1024 = vmatpush1.bf16.msra.mxu0 %v696
  %1025 = vmatprep.subr.bf16.mxu0 0
  %1026 = vmatpush1.bf16.msra.mxu0 %v703
  %1027 = vmatprep.subr.bf16.mxu0 0
  %1028 = vmatpush1.bf16.msra.mxu0 %v710
  %1029 = vmatprep.subr.bf16.mxu0 0
  %1030 = vmatpush1.bf16.msra.mxu0 %v717
  %1031 = vmatprep.subr.bf16.mxu0 0
  %1032 = vmatpush1.bf16.msra.mxu0 %v724
  %1033 = vmatprep.subr.bf16.mxu0 0
  %1034 = vmatpush1.bf16.msra.mxu0 %v731
  %1035 = vmatprep.subr.bf16.mxu0 0
  %1036 = vmatpush1.bf16.msra.mxu0 %v738
  %1037 = vmatprep.subr.bf16.mxu0 0
  %1038 = vmatpush1.bf16.msra.mxu0 %v745
  %1039 = vmatprep.subr.bf16.mxu0 0
  %1040 = vmatpush1.bf16.msra.mxu0 %v752
  %1041 = vmatprep.subr.bf16.mxu0 0
  %1042 = vmatpush1.bf16.msra.mxu0 %v759
  %1043 = vmatprep.subr.bf16.mxu0 0
  %1044 = vmatpush1.bf16.msra.mxu0 %v766
  %1045 = vmatprep.subr.bf16.mxu0 0
  %1046 = vmatpush1.bf16.msra.mxu0 %v773
  %1047 = vmatprep.mubr.bf16.mxu0 %v144
  %1048 = vmatmul.mubr.bf16.gmra.mrb[0].mxu0 %v143
  %v1049 = vpop.f32.mrb[0].mxu0
  %v1050 = vadd.f32 %v302, %v1049
  %v1051 = vpop.f32.mrb[0].mxu0
  %v1052 = vpop.f32.mrb[0].mxu0
  %v1053 = vadd.f32 %v302, %v1052
  %v1054 = vpop.f32.mrb[0].mxu0
  %1055 = vdwg.mxu0
  %v1056 = vtanh.pop %v921
  %v1057 = vtanh.pop %v923
  %v1058 = vtanh.pop %v964
  %v1059 = vtanh.pop %v966
  %v1060 = vtanh.pop %v1007
  %v1061 = vtanh.pop %v1009
  %v1062 = vtanh.pop %v1050
  %v1063 = vtanh.pop %v925
  %v1064 = vtanh.pop %v927
  %v1065 = vtanh.pop %v968
  %v1066 = vtanh.pop %v970
  %v1067 = vtanh.pop %v1011
  %v1068 = vtanh.pop %v1013
  %v1069 = vtanh.pop %v1053
  %v1070 = vpack.c.bf16 %v1063, %v1056
  %v1071 = vpack.c.bf16 %v1064, %v1057
  %v1072 = vpack.c.bf16 %v1065, %v1058
  %v1073 = vpack.c.bf16 %v1066, %v1059
  %v1074 = vpack.c.bf16 %v1067, %v1060
  %v1075 = vpack.c.bf16 %v1068, %v1061
  %v1076 = vpack.c.bf16 %v1069, %v1062
  %v1084 = vunpack.c.l.b16 %v1070
  %v1085 = vunpack.c.l.b16 %v1071
  %v1086 = vunpack.c.l.b16 %v1072
  %v1087 = vunpack.c.l.b16 %v1073
  %v1088 = vunpack.c.l.b16 %v1074
  %v1089 = vunpack.c.l.b16 %v1075
  %v1090 = vunpack.c.l.b16 %v1076
  %v1091 = vunpack.c.h.b16 %v1070
  %v1092 = vunpack.c.h.b16 %v1071
  %v1093 = vunpack.c.h.b16 %v1072
  %v1094 = vunpack.c.h.b16 %v1073
  %v1095 = vunpack.c.h.b16 %v1074
  %v1096 = vunpack.c.h.b16 %v1075
  %v1097 = vunpack.c.h.b16 %v1076
  %v1098 = vpack.c.b16 %v1085, %v1084
  %v1099 = vpack.c.b16 %v1087, %v1086
  %v1100 = vpack.c.b16 %v1089, %v1088
  %v1101 = vpack.c.b16 %v1090, %v1090
  %v1102 = vpack.c.b16 %v1092, %v1091
  %v1103 = vpack.c.b16 %v1094, %v1093
  %v1104 = vpack.c.b16 %v1096, %v1095
  %v1105 = vpack.c.b16 %v1097, %v1097
  %1114 = vst [vmem:[%s5] sm:$0xff] %v1098
  %1115 = vst [vmem:[%s5 + $0x8] sm:$0xff] %v1099
  %1116 = vst [vmem:[%s5 + $0x10] sm:$0xff] %v1100
  %vm1117 = vcmask 125952
  %1118 = vst.msk [vmem:[%s5 + $0x18] sm:$0xf] %vm1117, %v1101
  %1119 = vst [vmem:[%s5 + $0x1c] sm:$0xff] %v1102
  %1120 = vst [vmem:[%s5 + $0x24] sm:$0xff] %v1103
  %1121 = vst [vmem:[%s5 + $0x2c] sm:$0xff] %v1104
  %1122 = vst.msk [vmem:[%s5 + $0x34] sm:$0xf] %vm1117, %v1105
  // Predicated region
  $region22: #{generator_forward.1} parent=0 // pred_check
    _
  $region23: #{generator_forward.1} parent=0 // pred_check_branch
    %1124 = sbr.rel (0) target = $region25
  $region24: #{generator_forward.1} parent=0 // pred_region
    _
  $region25: #{generator_forward.1} parent=0 // pred_fallthru
    _
  // Predicated region
  $region26: #{generator_forward.1} parent=0 // pred_check
    _
  $region27: #{generator_forward.1} parent=0 // pred_check_branch
    %1126 = sbr.rel (0) target = $region29
  $region28: #{generator_forward.1} parent=0 // pred_region
    _
  $region29: #{generator_forward.1} parent=0 // pred_fallthru
    _

</llo_original>
